<compile_context>
chip_gen: v5e
topology: v5e:2x2
jax: 0.10.0
libtpu: 0.0.40
codegen_flags: <defaults>
</compile_context>

<pallas_src>
import functools

import numpy as np
import jax
import jax.numpy as jnp
from jax.experimental import pallas as pl
from jax.experimental.pallas import tpu as pltpu

HIDDEN = 256      # per-stream hidden width of the PyTorch module
TB_MAX = 2048     # batch-tile cap (multiple of 8); per-tile VMEM ~7 MiB at 2048


def _round_up(x, m):
    return ((x + m - 1) // m) * m


# ----------------------------- kernel ---------------------------------------
def dueling_head_kernel(x_ref, w1_ref, b1_ref, w2_ref, b2_ref, out_ref, *, n_adv):
    # in-kernel f32 -> bf16 cast: free VPU work hidden under the matmul,
    # and x only ever crosses HBM once (as f32).
    x = x_ref[...].astype(w1_ref.dtype)                              # [TB, F] bf16

    # fused layer 1 (value|advantage hidden), f32 accumulate + f32 epilogue
    h = jnp.dot(x, w1_ref[...], preferred_element_type=jnp.float32)  # [TB, 512]
    h = jnp.maximum(h + b1_ref[...], 0.0)                            # bias + ReLU (f32)

    # fused, lane-dense layer 2: cols [0..A-1]=advantage, col A=value, rest zero
    y = jnp.dot(h.astype(w2_ref.dtype), w2_ref[...],
                preferred_element_type=jnp.float32) + b2_ref[...]    # [TB, 128*]

    v = y[:, n_adv:n_adv + 1]                                        # [TB, 1] value
    # padded columns (and their bias) are exactly zero, so sum(all) - v == sum(adv)
    adv_sum = jnp.sum(y, axis=1, keepdims=True) - v                  # [TB, 1]
    adv_mean = adv_sum * (1.0 / n_adv)

    # combine on the full lane-dense slab (unmasked vst); cols >= A are junk.
    out_ref[...] = y + (v - adv_mean)


# ----------------------------- wrappers ---------------------------------------
def dueling_head_padded(x, params):
    """Returns the lane-padded [B, n_pad] f32 slab; only [:, :n_adv] is valid."""
    w1, b1, w2, b2 = params["w1"], params["b1"], params["w2"], params["b2"]
    n_adv = params["n_adv"]
    B, F = x.shape
    H2 = w1.shape[1]          # 2 * HIDDEN
    n_pad = w2.shape[1]       # lane-padded output width (multiple of 128)

    # Batch tiling:
    #   * small B: single full-batch tile (block dim == array dim, no (8,) constraint)
    #   * large B: >= 2 tiles (so the "parallel" axis can use both v7x TensorCores),
    #     each a multiple of 8 rows, capped at TB_MAX to amortize per-step overhead
    #     while keeping per-tile VMEM a few MiB (well under the 32 MiB scoped default).
    if B <= 256:
        TB = B
    else:
        TB = min(TB_MAX, _round_up(pl.cdiv(B, 2), 8))
    grid = (pl.cdiv(B, TB),)

    # advisory cost hint so XLA can schedule/overlap this small custom call
    flops = 2 * B * (F * H2 + H2 * n_pad)
    bytes_accessed = (B * F * 4 + B * n_pad * 4                       # x in, slab out (f32)
                      + F * H2 * w1.dtype.itemsize                    # W1
                      + H2 * n_pad * w2.dtype.itemsize                # W2
                      + H2 * 4 + n_pad * 4)                           # biases (f32)
    cost = pl.CostEstimate(flops=flops, transcendentals=0,
                           bytes_accessed=bytes_accessed)

    return pl.pallas_call(
        functools.partial(dueling_head_kernel, n_adv=n_adv),
        out_shape=jax.ShapeDtypeStruct((B, n_pad), jnp.float32),
        grid_spec=pltpu.PrefetchScalarGridSpec(
            num_scalar_prefetch=0,
            grid=grid,
            in_specs=[
                pl.BlockSpec((TB, F), lambda i: (i, 0)),        # x tile (f32, pipelined)
                pl.BlockSpec((F, H2), lambda i: (0, 0)),        # W1 resident
                pl.BlockSpec((1, H2), lambda i: (0, 0)),        # b1 resident
                pl.BlockSpec((H2, n_pad), lambda i: (0, 0)),    # W2 resident
                pl.BlockSpec((1, n_pad), lambda i: (0, 0)),     # b2 resident
            ],
            out_specs=pl.BlockSpec((TB, n_pad), lambda i: (i, 0)),
        ),
        compiler_params=pltpu.CompilerParams(
            dimension_semantics=("parallel",),   # shard batch tiles across TCs on v7x
        ),
        cost_estimate=cost,
    )(x, w1, b1, w2, b2)


def dueling_head(x, params):
    """Module-equivalent API: [B, n_adv] Q-values.

    The [:, :n_adv] slice is kept here only for API parity with the PyTorch module;
    fused consumers should call dueling_head_padded() and slice/consume lazily so
    XLA does not pay a standalone copy pass over the padded slab.
    """
    return dueling_head_padded(x, params)[:, :params["n_adv"]]


# ------------- deterministic parameter construction (NoisyLinear init) -------
def _scale_noise(key, size):
    x = jax.random.normal(key, (size,), dtype=jnp.float32)
    return jnp.sign(x) * jnp.sqrt(jnp.abs(x))


def make_noisy_linear(key, in_features, out_features, std_init=0.5):
    """Effective (training-mode) weight [in, out] and bias [1, out], f32."""
    k_wmu, k_bmu, k_ein, k_eout = jax.random.split(key, 4)
    mu_range = 1.0 / np.sqrt(in_features)

    weight_mu = jax.random.uniform(k_wmu, (out_features, in_features),
                                   minval=-mu_range, maxval=mu_range,
                                   dtype=jnp.float32)
    weight_sigma = jnp.full((out_features, in_features),
                            std_init / np.sqrt(in_features), dtype=jnp.float32)
    bias_mu = jax.random.uniform(k_bmu, (out_features,),
                                 minval=-mu_range, maxval=mu_range,
                                 dtype=jnp.float32)
    bias_sigma = jnp.full((out_features,),
                          std_init / np.sqrt(out_features), dtype=jnp.float32)

    eps_in = _scale_noise(k_ein, in_features)
    eps_out = _scale_noise(k_eout, out_features)
    weight_epsilon = jnp.outer(eps_out, eps_in)
    bias_epsilon = eps_out

    w_eff = weight_mu + weight_sigma * weight_epsilon                # [out, in]
    b_eff = bias_mu + bias_sigma * bias_epsilon                      # [out]
    return w_eff.T, b_eff[None, :]                                   # [in,out],[1,out]


def make_dueling_head_params(key, feature_dim, output_dim, mxu_dtype=jnp.bfloat16):
    k1, k2, k3, k4 = jax.random.split(key, 4)
    w1v, b1v = make_noisy_linear(k1, feature_dim, HIDDEN)            # [F,256],[1,256]
    w2v, b2v = make_noisy_linear(k2, HIDDEN, 1)                      # [256,1],[1,1]
    w1a, b1a = make_noisy_linear(k3, feature_dim, HIDDEN)            # [F,256],[1,256]
    w2a, b2a = make_noisy_linear(k4, HIDDEN, output_dim)             # [256,A],[1,A]

    A = output_dim
    n_pad = _round_up(A + 1, 128)                                    # lane-dense width

    # fused layer 1: columns [0..255]=value hidden, [256..511]=advantage hidden
    w1 = jnp.concatenate([w1v, w1a], axis=1)                         # [F, 512]
    b1 = jnp.concatenate([b1v, b1a], axis=1)                         # [1, 512]

    # fused, lane-padded, block-diagonal layer 2:
    #   cols 0..A-1 <- advantage head (reads adv hidden rows 256..511)
    #   col  A      <- value head     (reads value hidden rows 0..255)
    #   remaining cols (and their bias) are EXACTLY zero (mean-via-sum relies on this).
    w2 = jnp.zeros((2 * HIDDEN, n_pad), jnp.float32)
    w2 = w2.at[HIDDEN:, :A].set(w2a)
    w2 = w2.at[:HIDDEN, A:A + 1].set(w2v)
    b2 = jnp.zeros((1, n_pad), jnp.float32)
    b2 = b2.at[:, :A].set(b2a)
    b2 = b2.at[:, A:A + 1].set(b2v)

    return dict(w1=w1.astype(mxu_dtype), b1=b1,
                w2=w2.astype(mxu_dtype), b2=b2,
                n_adv=A)


# ----------------------------- reference -------------------------------------
def dueling_head_ref(x, params):
    """Pure-JAX reference mirroring the kernel's mixed precision (bf16 matmul
    operands, f32 accumulate / epilogue), with the original two-stream structure."""
    A = params["n_adv"]
    mxu_dtype = params["w1"].dtype
    w1 = params["w1"].astype(jnp.float32)
    w2 = params["w2"].astype(jnp.float32)
    b1, b2 = params["b1"], params["b2"]

    xb = x.astype(mxu_dtype).astype(jnp.float32)
    h = jnp.maximum(xb @ w1 + b1, 0.0)
    hb = h.astype(mxu_dtype).astype(jnp.float32)
    y = hb @ w2 + b2
    v = y[:, A:A + 1]
    adv = y[:, :A]
    return v + adv - jnp.mean(adv, axis=1, keepdims=True)


# ----------------------------- test ------------------------------------------
if __name__ == "__main__":
    FEATURE_DIM, OUTPUT_DIM = 32, 8
    key = jax.random.PRNGKey(0)
    k_params, k_x1, k_x2 = jax.random.split(key, 3)
    params = make_dueling_head_params(k_params, FEATURE_DIM, OUTPUT_DIM)

    # small-batch check (single full-batch tile)
    x_small = jax.random.normal(k_x1, (4, FEATURE_DIM), dtype=jnp.float32)
    out_small = jax.block_until_ready(dueling_head(x_small, params))
    ref_small = dueling_head_ref(x_small, params)
    np.testing.assert_allclose(np.asarray(out_small), np.asarray(ref_small),
                               rtol=1e-4, atol=1e-4)

    # multi-tile check: B=600 -> TB=304 -> 2 grid steps (second tile partial),
    # exercises the parallel batch grid, resident weights, and OOB write masking.
    x_big = jax.random.normal(k_x2, (600, FEATURE_DIM), dtype=jnp.float32)
    out_big = jax.block_until_ready(dueling_head(x_big, params))
    ref_big = dueling_head_ref(x_big, params)
    np.testing.assert_allclose(np.asarray(out_big), np.asarray(ref_big),
                               rtol=1e-4, atol=1e-4)

    print("KERNEL_OK")
</pallas_src>

<mosaic_0001>
module attributes {stable_mosaic.version = 11 : i64} {
  func.func @dueling_head_kernel(%arg0: i32, %arg1: memref<4x32xf32, #tpu.memory_space<vmem>>, %arg2: memref<32x512xbf16, #tpu.memory_space<vmem>>, %arg3: memref<1x512xf32, #tpu.memory_space<vmem>>, %arg4: memref<512x128xbf16, #tpu.memory_space<vmem>>, %arg5: memref<1x128xf32, #tpu.memory_space<vmem>>, %arg6: memref<4x128xf32, #tpu.memory_space<vmem>>) attributes {dimension_semantics = [#tpu.dimension_semantics<parallel>], iteration_bounds = array<i64: 1>, scalar_prefetch = 0 : i64, scratch_operands = 0 : i64, tpu.core_type = #tpu.core_type<tc>, window_params = [{transform_indices = @transform_0, window_bounds = array<i64: 4, 32>}, {pipeline_mode = #tpu.pipeline_mode<synchronous>, transform_indices = @transform_1, window_bounds = array<i64: 32, 512>}, {pipeline_mode = #tpu.pipeline_mode<synchronous>, transform_indices = @transform_2, window_bounds = array<i64: 1, 512>}, {pipeline_mode = #tpu.pipeline_mode<synchronous>, transform_indices = @transform_3, window_bounds = array<i64: 512, 128>}, {pipeline_mode = #tpu.pipeline_mode<synchronous>, transform_indices = @transform_4, window_bounds = array<i64: 1, 128>}, {transform_indices = @transform_5, window_bounds = array<i64: 4, 128>}]} {
    %c0 = arith.constant 0 : index
    %c0_0 = arith.constant 0 : index
    %0 = vector.load %arg1[%c0, %c0_0] : memref<4x32xf32, #tpu.memory_space<vmem>>, vector<4x32xf32>
    %1 = arith.truncf %0 : vector<4x32xf32> to vector<4x32xbf16>
    %c0_1 = arith.constant 0 : index
    %c0_2 = arith.constant 0 : index
    %2 = vector.load %arg2[%c0_1, %c0_2] : memref<32x512xbf16, #tpu.memory_space<vmem>>, vector<32x512xbf16>
    %cst = arith.constant dense<0.000000e+00> : vector<4x512xf32>
    %3 = tpu.matmul %1, %2, %cst {dimension_numbers = #tpu.dot_dimension_numbers<[1], [0], [0], [1], [0, 0, 1, 1], [], []>} : vector<4x32xbf16>, vector<32x512xbf16>, vector<4x512xf32> -> vector<4x512xf32>
    %c0_3 = arith.constant 0 : index
    %c0_4 = arith.constant 0 : index
    %4 = vector.load %arg3[%c0_3, %c0_4] : memref<1x512xf32, #tpu.memory_space<vmem>>, vector<1x512xf32>
    %5 = vector.broadcast %4 : vector<1x512xf32> to vector<4x512xf32>
    %6 = arith.addf %3, %5 : vector<4x512xf32>
    %cst_5 = arith.constant 0.000000e+00 : f32
    %7 = vector.broadcast %cst_5 : f32 to vector<4x512xf32>
    %8 = arith.maximumf %6, %7 : vector<4x512xf32>
    %9 = arith.truncf %8 : vector<4x512xf32> to vector<4x512xbf16>
    %c0_6 = arith.constant 0 : index
    %c0_7 = arith.constant 0 : index
    %10 = vector.load %arg4[%c0_6, %c0_7] : memref<512x128xbf16, #tpu.memory_space<vmem>>, vector<512x128xbf16>
    %cst_8 = arith.constant dense<0.000000e+00> : vector<4x128xf32>
    %11 = tpu.matmul %9, %10, %cst_8 {dimension_numbers = #tpu.dot_dimension_numbers<[1], [0], [0], [1], [0, 0, 1, 1], [], []>} : vector<4x512xbf16>, vector<512x128xbf16>, vector<4x128xf32> -> vector<4x128xf32>
    %c0_9 = arith.constant 0 : index
    %c0_10 = arith.constant 0 : index
    %12 = vector.load %arg5[%c0_9, %c0_10] : memref<1x128xf32, #tpu.memory_space<vmem>>, vector<1x128xf32>
    %13 = vector.broadcast %12 : vector<1x128xf32> to vector<4x128xf32>
    %14 = arith.addf %11, %13 : vector<4x128xf32>
    %15 = vector.extract_strided_slice %14 {offsets = [0, 8], sizes = [4, 1], strides = [1, 1]} : vector<4x128xf32> to vector<4x1xf32>
    %cst_11 = arith.constant dense<0.000000e+00> : vector<4xf32>
    %16 = vector.multi_reduction <add>, %14, %cst_11 [1] : vector<4x128xf32> to vector<4xf32>
    %17 = vector.shape_cast %16 : vector<4xf32> to vector<4x1xf32>
    %18 = arith.subf %17, %15 : vector<4x1xf32>
    %cst_12 = arith.constant 1.250000e-01 : f32
    %19 = vector.broadcast %cst_12 : f32 to vector<4x1xf32>
    %20 = arith.mulf %18, %19 : vector<4x1xf32>
    %21 = arith.subf %15, %20 : vector<4x1xf32>
    %22 = vector.broadcast %21 : vector<4x1xf32> to vector<4x128xf32>
    %23 = arith.addf %14, %22 : vector<4x128xf32>
    %c0_13 = arith.constant 0 : index
    %c0_14 = arith.constant 0 : index
    %24 = vector.load %arg6[%c0_13, %c0_14] : memref<4x128xf32, #tpu.memory_space<vmem>>, vector<4x128xf32>
    tpu.vector_store %arg6[%c0_13, %c0_14], %23 {strides = array<i32>} : memref<4x128xf32, #tpu.memory_space<vmem>>, vector<4x128xf32>,
    return
  }
  func.func @transform_0(%arg0: i32) -> (i32, i32) {
    %c0_i32 = arith.constant 0 : i32
    %c0_i32_0 = arith.constant 0 : i32
    return %arg0, %c0_i32 : i32, i32
  }
  func.func @transform_1(%arg0: i32) -> (i32, i32) {
    %c0_i32 = arith.constant 0 : i32
    %c0_i32_0 = arith.constant 0 : i32
    %c0_i32_1 = arith.constant 0 : i32
    return %c0_i32, %c0_i32_0 : i32, i32
  }
  func.func @transform_2(%arg0: i32) -> (i32, i32) {
    %c0_i32 = arith.constant 0 : i32
    %c0_i32_0 = arith.constant 0 : i32
    %c0_i32_1 = arith.constant 0 : i32
    return %c0_i32, %c0_i32_0 : i32, i32
  }
  func.func @transform_3(%arg0: i32) -> (i32, i32) {
    %c0_i32 = arith.constant 0 : i32
    %c0_i32_0 = arith.constant 0 : i32
    %c0_i32_1 = arith.constant 0 : i32
    return %c0_i32, %c0_i32_0 : i32, i32
  }
  func.func @transform_4(%arg0: i32) -> (i32, i32) {
    %c0_i32 = arith.constant 0 : i32
    %c0_i32_0 = arith.constant 0 : i32
    %c0_i32_1 = arith.constant 0 : i32
    return %c0_i32, %c0_i32_0 : i32, i32
  }
  func.func @transform_5(%arg0: i32) -> (i32, i32) {
    %c0_i32 = arith.constant 0 : i32
    %c0_i32_0 = arith.constant 0 : i32
    return %arg0, %c0_i32 : i32, i32
  }
}

</mosaic_0001>

<llo_original>
// kernel: tpu_custom_call.1
$region0: #{tpu_custom_call.1}
  #allocation0 [shape = 'u32[]', space=smem, size = 0x4, offset = 0x4, fixed_abs, tag = 'smem constant byte address 0x4 - core index']
  #allocation1 [shape = 'u32[72,128]{1,0:T(1,128)}', space=vmem, size = 0x9000, scoped, tag = 'internal scratch']
  %s0 = inlined_call_operand.hbm [shape: f32[4,32], index: 0, kind: input, shape index: {}]
  %s1 = inlined_call_operand.hbm [shape: bf16[32,512], index: 1, kind: input, shape index: {}]
  %s2 = inlined_call_operand.hbm [shape: f32[1,512], index: 2, kind: input, shape index: {}]
  %s3 = inlined_call_operand.hbm [shape: bf16[512,128], index: 3, kind: input, shape index: {}]
  %s4 = inlined_call_operand.vmem [shape: f32[1,128], index: 4, kind: input, shape index: {}]
  %s5 = inlined_call_operand.hbm [shape: f32[4,128], index: 5, kind: output, shape index: {}]
  %s6 = sld [smem:[#allocation0]]
  $region46: #{tpu_custom_call.1} parent=0
    _
  %s8 = ssub.s32 1, %s6
  %s9 = scalar_select 0, %s8, %s6
  $region1: #{tpu_custom_call.1} parent=0
    #allocation2 [shape = 'u8[2048]{0}', space=vmem, size = 0x800, scoped, tag = 'input window, operand 0, single buffered']
    #allocation3 [shape = 's32[1]{0}', space=sflag, size = 0x4, scoped, tag = 'scoped memory for tpu_custom_call.1']
    #allocation4 [shape = 's32[1]{0}', space=sflag, size = 0x4, scoped, tag = 'scoped memory for tpu_custom_call.1']
    #allocation5 [shape = 'u8[32768]{0}', space=vmem, size = 0x8000, scoped, tag = 'input window, operand 1, single buffered']
    #allocation6 [shape = 's32[1]{0}', space=sflag, size = 0x4, scoped, tag = 'scoped memory for tpu_custom_call.1']
    #allocation7 [shape = 'u8[2048]{0}', space=vmem, size = 0x800, scoped, tag = 'input window, operand 2, single buffered']
    #allocation8 [shape = 'u8[131072]{0}', space=vmem, size = 0x20000, scoped, tag = 'input window, operand 3, single buffered']
    #allocation9 [shape = 's32[1]{0}', space=sflag, size = 0x4, scoped, tag = 'scoped memory for tpu_custom_call.1']
    #allocation10 [shape = 'u8[2048]{0}', space=vmem, size = 0x800, scoped, tag = 'output window, operand 0, single buffered']
    %10 = vsyncpa [#allocation3], 0
    %11 = vsyncpa [#allocation6], 0
    %12 = vsyncpa [#allocation9], 0
    %13 = vsyncpa [#allocation4], 0
    // Predicated region
    $region2: #{tpu_custom_call.1} parent=1 // pred_check
      _
    $region3: #{tpu_custom_call.1} parent=1 // pred_check_branch
      %15 = sbr.rel (0) target = $region5
    $region4: #{tpu_custom_call.1} parent=1 // pred_region
      %17 = vsyncadd [#allocation3], 0
      %s19 = sshll.u32 %s0, 4
      %s20 = int_to_ptr.hbm [resolvable:$true] %s19
      %s21 = sshll.u32 [#allocation2], 4
      %s22 = int_to_ptr.vmem [resolvable:$true] %s21
      %24 = dma.hbm_to_vmem [thread:$0]  %s20, 64, %s22, [#allocation3]
    $region5: #{tpu_custom_call.1} parent=1 // pred_fallthru
      _
    // Predicated region
    $region6: #{tpu_custom_call.1} parent=1 // pred_check
      _
    $region7: #{tpu_custom_call.1} parent=1 // pred_check_branch
      %26 = sbr.rel (0) target = $region9
    $region8: #{tpu_custom_call.1} parent=1 // pred_region
      %28 = vsyncadd [#allocation6], 0
      %s29 = sshll.u32 %s1, 4
      %s30 = int_to_ptr.hbm [resolvable:$true] %s29
      %s31 = sshll.u32 [#allocation5], 4
      %s32 = int_to_ptr.vmem [resolvable:$true] %s31
      %37 = dma.hbm_to_vmem [thread:$0]  %s30, 1024, %s32, [#allocation6], 256, 256, 16
    $region9: #{tpu_custom_call.1} parent=1 // pred_fallthru
      _
    // Predicated region
    $region10: #{tpu_custom_call.1} parent=1 // pred_check
      _
    $region11: #{tpu_custom_call.1} parent=1 // pred_check_branch
      %39 = sbr.rel (0) target = $region13
    $region12: #{tpu_custom_call.1} parent=1 // pred_region
      %41 = vsyncadd [#allocation6], 0
      %s43 = sshll.u32 %s2, 4
      %s44 = int_to_ptr.hbm [resolvable:$true] %s43
      %s45 = sshll.u32 [#allocation7], 4
      %s46 = int_to_ptr.vmem [resolvable:$true] %s45
      %48 = dma.hbm_to_vmem [thread:$0]  %s44, 64, %s46, [#allocation6]
    $region13: #{tpu_custom_call.1} parent=1 // pred_fallthru
      _
    // Predicated region
    $region14: #{tpu_custom_call.1} parent=1 // pred_check
      _
    $region15: #{tpu_custom_call.1} parent=1 // pred_check_branch
      %50 = sbr.rel (0) target = $region17
    $region16: #{tpu_custom_call.1} parent=1 // pred_region
      %52 = vsyncadd [#allocation9], 0
      %s53 = sshll.u32 %s3, 4
      %s54 = int_to_ptr.hbm [resolvable:$true] %s53
      %s55 = sshll.u32 [#allocation8], 4
      %s56 = int_to_ptr.vmem [resolvable:$true] %s55
      %61 = dma.hbm_to_vmem [thread:$0]  %s54, 4096, %s56, [#allocation9], 64, 64, 4
    $region17: #{tpu_custom_call.1} parent=1 // pred_fallthru
      _
    // Predicated region
    $region18: #{tpu_custom_call.1} parent=1 // pred_check
      _
    $region19: #{tpu_custom_call.1} parent=1 // pred_check_branch
      %63 = sbr.rel (0) target = $region21
    $region20: #{tpu_custom_call.1} parent=1 // pred_region
      _
    $region21: #{tpu_custom_call.1} parent=1 // pred_fallthru
      _
    // Predicated region
    $region22: #{tpu_custom_call.1} parent=1 // pred_check
      _
    $region23: #{tpu_custom_call.1} parent=1 // pred_check_branch
      %65 = sbr.rel (0) target = $region25
    $region24: #{tpu_custom_call.1} parent=1 // pred_region
      %67 = dma.done [#allocation3], 64
    $region25: #{tpu_custom_call.1} parent=1 // pred_fallthru
      _
    // Predicated region
    $region26: #{tpu_custom_call.1} parent=1 // pred_check
      _
    $region27: #{tpu_custom_call.1} parent=1 // pred_check_branch
      %69 = sbr.rel (0) target = $region29
    $region28: #{tpu_custom_call.1} parent=1 // pred_region
      %71 = dma.done [#allocation6], 1024
    $region29: #{tpu_custom_call.1} parent=1 // pred_fallthru
      _
    // Predicated region
    $region30: #{tpu_custom_call.1} parent=1 // pred_check
      _
    $region31: #{tpu_custom_call.1} parent=1 // pred_check_branch
      %73 = sbr.rel (0) target = $region33
    $region32: #{tpu_custom_call.1} parent=1 // pred_region
      %75 = dma.done [#allocation6], 64
    $region33: #{tpu_custom_call.1} parent=1 // pred_fallthru
      _
    // Predicated region
    $region34: #{tpu_custom_call.1} parent=1 // pred_check
      _
    $region35: #{tpu_custom_call.1} parent=1 // pred_check_branch
      %77 = sbr.rel (0) target = $region37
    $region36: #{tpu_custom_call.1} parent=1 // pred_region
      %79 = dma.done [#allocation9], 4096
    $region37: #{tpu_custom_call.1} parent=1 // pred_fallthru
      _
    %v81 = vld [vmem:[#allocation2] sm:$0xf]
    %v82 = vpack.c.bf16 %v81, %v81
    %v83 = vld [vmem:[#allocation5] sm:$0xff]
    %v84 = vld [vmem:[#allocation5 + $0x8] sm:$0xff]
    %v85 = vld [vmem:[#allocation5 + $0x10] sm:$0xff]
    %v86 = vld [vmem:[#allocation5 + $0x18] sm:$0xff]
    %v87 = vld [vmem:[#allocation5 + $0x20] sm:$0xff]
    %v88 = vld [vmem:[#allocation5 + $0x28] sm:$0xff]
    %v89 = vld [vmem:[#allocation5 + $0x30] sm:$0xff]
    %v90 = vld [vmem:[#allocation5 + $0x38] sm:$0xff]
    %v91 = vld [vmem:[#allocation7] sm:$0xf]
    %v93 = vperm.slane %v91, 0
    %v94 = vperm.slane %v91, 1
    %v95 = vperm.slane %v91, 2
    %v96 = vperm.slane %v91, 3
    %v109 = vunpack.c.l.b16 %v83
    %v110 = vunpack.c.h.b16 %v83
    %v111 = vunpack.c.l.b16 %v84
    %v112 = vunpack.c.h.b16 %v84
    %v113 = vunpack.c.l.b16 %v85
    %v114 = vunpack.c.h.b16 %v85
    %v115 = vunpack.c.l.b16 %v86
    %v116 = vunpack.c.h.b16 %v86
    %v117 = vunpack.c.l.b16 %v87
    %v118 = vunpack.c.h.b16 %v87
    %v119 = vunpack.c.l.b16 %v88
    %v120 = vunpack.c.h.b16 %v88
    %v121 = vunpack.c.l.b16 %v89
    %v122 = vunpack.c.h.b16 %v89
    %v123 = vunpack.c.l.b16 %v90
    %v124 = vunpack.c.h.b16 %v90
    %v125 = vpack.c.b16 %v113, %v109
    %v126 = vpack.c.b16 %v114, %v110
    %v127 = vpack.c.b16 %v115, %v111
    %v128 = vpack.c.b16 %v116, %v112
    %v129 = vpack.c.b16 %v121, %v117
    %v130 = vpack.c.b16 %v122, %v118
    %v131 = vpack.c.b16 %v123, %v119
    %v132 = vpack.c.b16 %v124, %v120
    %vm141 = vcmask 261120
    %v143 = vsel %vm141, %v82, 0
    %145 = vmatpush.bf16.msra.mxu0 0
    %146 = vmatpush.bf16.msra.mxu0 0
    %147 = vmatpush.bf16.msra.mxu0 0
    %148 = vmatpush.bf16.msra.mxu0 0
    %149 = vmatpush.bf16.msra.mxu0 0
    %150 = vmatpush.bf16.msra.mxu0 0
    %151 = vmatpush.bf16.msra.mxu0 %v129
    %152 = vmatpush.bf16.msra.mxu0 %v125
    %153 = vmatmul.bf16.gmra.mxu0 %v143
    %v154 = vpop.f32.mrf.mxu0
    %v155 = vadd.f32 %v93, %v154
    %v156 = vpop.f32.mrf.mxu0
    %157 = vdwg.mxu0
    %158 = vmatpush.bf16.msra.mxu0 0
    %159 = vmatpush.bf16.msra.mxu0 0
    %160 = vmatpush.bf16.msra.mxu0 0
    %161 = vmatpush.bf16.msra.mxu0 0
    %162 = vmatpush.bf16.msra.mxu0 0
    %163 = vmatpush.bf16.msra.mxu0 0
    %164 = vmatpush.bf16.msra.mxu0 %v130
    %165 = vmatpush.bf16.msra.mxu0 %v126
    %166 = vmatmul.bf16.gmra.mxu0 %v143
    %v167 = vpop.f32.mrf.mxu0
    %v168 = vadd.f32 %v94, %v167
    %v169 = vpop.f32.mrf.mxu0
    %170 = vdwg.mxu0
    %171 = vmatpush.bf16.msra.mxu0 0
    %172 = vmatpush.bf16.msra.mxu0 0
    %173 = vmatpush.bf16.msra.mxu0 0
    %174 = vmatpush.bf16.msra.mxu0 0
    %175 = vmatpush.bf16.msra.mxu0 0
    %176 = vmatpush.bf16.msra.mxu0 0
    %177 = vmatpush.bf16.msra.mxu0 %v131
    %178 = vmatpush.bf16.msra.mxu0 %v127
    %179 = vmatmul.bf16.gmra.mxu0 %v143
    %v180 = vpop.f32.mrf.mxu0
    %v181 = vadd.f32 %v95, %v180
    %v182 = vpop.f32.mrf.mxu0
    %183 = vdwg.mxu0
    %184 = vmatpush.bf16.msra.mxu0 0
    %185 = vmatpush.bf16.msra.mxu0 0
    %186 = vmatpush.bf16.msra.mxu0 0
    %187 = vmatpush.bf16.msra.mxu0 0
    %188 = vmatpush.bf16.msra.mxu0 0
    %189 = vmatpush.bf16.msra.mxu0 0
    %190 = vmatpush.bf16.msra.mxu0 %v132
    %191 = vmatpush.bf16.msra.mxu0 %v128
    %192 = vmatmul.bf16.gmra.mxu0 %v143
    %v193 = vpop.f32.mrf.mxu0
    %v194 = vadd.f32 %v96, %v193
    %v195 = vpop.f32.mrf.mxu0
    %196 = vdwg.mxu0
    %v197 = vmax.f32 %v155, 0.0
    %v198 = vmax.f32 %v168, 0.0
    %v199 = vmax.f32 %v181, 0.0
    %v200 = vmax.f32 %v194, 0.0
    %v201 = vpack.c.bf16 %v197, %v197
    %v202 = vpack.c.bf16 %v198, %v198
    %v203 = vpack.c.bf16 %v199, %v199
    %v204 = vpack.c.bf16 %v200, %v200
    %v205 = vld [vmem:[#allocation8] sm:$0xf]
    %v206 = vld [vmem:[#allocation8 + $0x4] sm:$0xf]
    %v207 = vld [vmem:[#allocation8 + $0x8] sm:$0xf]
    %v208 = vld [vmem:[#allocation8 + $0xc] sm:$0xf]
    %v209 = vld [vmem:[#allocation8 + $0x10] sm:$0xf]
    %v210 = vld [vmem:[#allocation8 + $0x14] sm:$0xf]
    %v211 = vld [vmem:[#allocation8 + $0x18] sm:$0xf]
    %v212 = vld [vmem:[#allocation8 + $0x1c] sm:$0xf]
    %v213 = vld [vmem:[#allocation8 + $0x20] sm:$0xf]
    %v214 = vld [vmem:[#allocation8 + $0x24] sm:$0xf]
    %v215 = vld [vmem:[#allocation8 + $0x28] sm:$0xf]
    %v216 = vld [vmem:[#allocation8 + $0x2c] sm:$0xf]
    %v217 = vld [vmem:[#allocation8 + $0x30] sm:$0xf]
    %v218 = vld [vmem:[#allocation8 + $0x34] sm:$0xf]
    %v219 = vld [vmem:[#allocation8 + $0x38] sm:$0xf]
    %v220 = vld [vmem:[#allocation8 + $0x3c] sm:$0xf]
    %v221 = vld [vmem:[#allocation8 + $0x40] sm:$0xf]
    %v222 = vld [vmem:[#allocation8 + $0x44] sm:$0xf]
    %v223 = vld [vmem:[#allocation8 + $0x48] sm:$0xf]
    %v224 = vld [vmem:[#allocation8 + $0x4c] sm:$0xf]
    %v225 = vld [vmem:[#allocation8 + $0x50] sm:$0xf]
    %v226 = vld [vmem:[#allocation8 + $0x54] sm:$0xf]
    %v227 = vld [vmem:[#allocation8 + $0x58] sm:$0xf]
    %v228 = vld [vmem:[#allocation8 + $0x5c] sm:$0xf]
    %v229 = vld [vmem:[#allocation8 + $0x60] sm:$0xf]
    %v230 = vld [vmem:[#allocation8 + $0x64] sm:$0xf]
    %v231 = vld [vmem:[#allocation8 + $0x68] sm:$0xf]
    %v232 = vld [vmem:[#allocation8 + $0x6c] sm:$0xf]
    %v233 = vld [vmem:[#allocation8 + $0x70] sm:$0xf]
    %v234 = vld [vmem:[#allocation8 + $0x74] sm:$0xf]
    %v235 = vld [vmem:[#allocation8 + $0x78] sm:$0xf]
    %v236 = vld [vmem:[#allocation8 + $0x7c] sm:$0xf]
    %v237 = vld [vmem:[#allocation8 + $0x80] sm:$0xf]
    %v238 = vld [vmem:[#allocation8 + $0x84] sm:$0xf]
    %v239 = vld [vmem:[#allocation8 + $0x88] sm:$0xf]
    %v240 = vld [vmem:[#allocation8 + $0x8c] sm:$0xf]
    %v241 = vld [vmem:[#allocation8 + $0x90] sm:$0xf]
    %v242 = vld [vmem:[#allocation8 + $0x94] sm:$0xf]
    %v243 = vld [vmem:[#allocation8 + $0x98] sm:$0xf]
    %v244 = vld [vmem:[#allocation8 + $0x9c] sm:$0xf]
    %v245 = vld [vmem:[#allocation8 + $0xa0] sm:$0xf]
    %v246 = vld [vmem:[#allocation8 + $0xa4] sm:$0xf]
    %v247 = vld [vmem:[#allocation8 + $0xa8] sm:$0xf]
    %v248 = vld [vmem:[#allocation8 + $0xac] sm:$0xf]
    %v249 = vld [vmem:[#allocation8 + $0xb0] sm:$0xf]
    %v250 = vld [vmem:[#allocation8 + $0xb4] sm:$0xf]
    %v251 = vld [vmem:[#allocation8 + $0xb8] sm:$0xf]
    %v252 = vld [vmem:[#allocation8 + $0xbc] sm:$0xf]
    %v253 = vld [vmem:[#allocation8 + $0xc0] sm:$0xf]
    %v254 = vld [vmem:[#allocation8 + $0xc4] sm:$0xf]
    %v255 = vld [vmem:[#allocation8 + $0xc8] sm:$0xf]
    %v256 = vld [vmem:[#allocation8 + $0xcc] sm:$0xf]
    %v257 = vld [vmem:[#allocation8 + $0xd0] sm:$0xf]
    %v258 = vld [vmem:[#allocation8 + $0xd4] sm:$0xf]
    %v259 = vld [vmem:[#allocation8 + $0xd8] sm:$0xf]
    %v260 = vld [vmem:[#allocation8 + $0xdc] sm:$0xf]
    %v261 = vld [vmem:[#allocation8 + $0xe0] sm:$0xf]
    %v262 = vld [vmem:[#allocation8 + $0xe4] sm:$0xf]
    %v263 = vld [vmem:[#allocation8 + $0xe8] sm:$0xf]
    %v264 = vld [vmem:[#allocation8 + $0xec] sm:$0xf]
    %v265 = vld [vmem:[#allocation8 + $0xf0] sm:$0xf]
    %v266 = vld [vmem:[#allocation8 + $0xf4] sm:$0xf]
    %v267 = vld [vmem:[#allocation8 + $0xf8] sm:$0xf]
    %v268 = vld [vmem:[#allocation8 + $0xfc] sm:$0xf]
    %v269 = vld [vmem:[%s4] sm:$0x1]
    %v271 = vperm.slane %v269, 0
    %v337 = vunpack.c.l.b16 %v205
    %v338 = vunpack.c.l.b16 %v206
    %v339 = vunpack.c.l.b16 %v207
    %v340 = vunpack.c.l.b16 %v208
    %v341 = vunpack.c.l.b16 %v209
    %v342 = vunpack.c.l.b16 %v210
    %v343 = vunpack.c.l.b16 %v211
    %v344 = vunpack.c.l.b16 %v212
    %v345 = vunpack.c.l.b16 %v213
    %v346 = vunpack.c.l.b16 %v214
    %v347 = vunpack.c.l.b16 %v215
    %v348 = vunpack.c.l.b16 %v216
    %v349 = vunpack.c.l.b16 %v217
    %v350 = vunpack.c.l.b16 %v218
    %v351 = vunpack.c.l.b16 %v219
    %v352 = vunpack.c.l.b16 %v220
    %v353 = vunpack.c.l.b16 %v221
    %v354 = vunpack.c.l.b16 %v222
    %v355 = vunpack.c.l.b16 %v223
    %v356 = vunpack.c.l.b16 %v224
    %v357 = vunpack.c.l.b16 %v225
    %v358 = vunpack.c.l.b16 %v226
    %v359 = vunpack.c.l.b16 %v227
    %v360 = vunpack.c.l.b16 %v228
    %v361 = vunpack.c.l.b16 %v229
    %v362 = vunpack.c.l.b16 %v230
    %v363 = vunpack.c.l.b16 %v231
    %v364 = vunpack.c.l.b16 %v232
    %v365 = vunpack.c.l.b16 %v233
    %v366 = vunpack.c.l.b16 %v234
    %v367 = vunpack.c.l.b16 %v235
    %v368 = vunpack.c.l.b16 %v236
    %v369 = vunpack.c.l.b16 %v237
    %v370 = vunpack.c.l.b16 %v238
    %v371 = vunpack.c.l.b16 %v239
    %v372 = vunpack.c.l.b16 %v240
    %v373 = vunpack.c.l.b16 %v241
    %v374 = vunpack.c.l.b16 %v242
    %v375 = vunpack.c.l.b16 %v243
    %v376 = vunpack.c.l.b16 %v244
    %v377 = vunpack.c.l.b16 %v245
    %v378 = vunpack.c.l.b16 %v246
    %v379 = vunpack.c.l.b16 %v247
    %v380 = vunpack.c.l.b16 %v248
    %v381 = vunpack.c.l.b16 %v249
    %v382 = vunpack.c.l.b16 %v250
    %v383 = vunpack.c.l.b16 %v251
    %v384 = vunpack.c.l.b16 %v252
    %v385 = vunpack.c.l.b16 %v253
    %v386 = vunpack.c.l.b16 %v254
    %v387 = vunpack.c.l.b16 %v255
    %v388 = vunpack.c.l.b16 %v256
    %v389 = vunpack.c.l.b16 %v257
    %v390 = vunpack.c.l.b16 %v258
    %v391 = vunpack.c.l.b16 %v259
    %v392 = vunpack.c.l.b16 %v260
    %v393 = vunpack.c.l.b16 %v261
    %v394 = vunpack.c.l.b16 %v262
    %v395 = vunpack.c.l.b16 %v263
    %v396 = vunpack.c.l.b16 %v264
    %v397 = vunpack.c.l.b16 %v265
    %v398 = vunpack.c.l.b16 %v266
    %v399 = vunpack.c.l.b16 %v267
    %v400 = vunpack.c.l.b16 %v268
    %v401 = vpack.c.b16 %v338, %v337
    %v402 = vpack.c.b16 %v340, %v339
    %v403 = vpack.c.b16 %v342, %v341
    %v404 = vpack.c.b16 %v344, %v343
    %v405 = vpack.c.b16 %v346, %v345
    %v406 = vpack.c.b16 %v348, %v347
    %v407 = vpack.c.b16 %v350, %v349
    %v408 = vpack.c.b16 %v352, %v351
    %v409 = vpack.c.b16 %v354, %v353
    %v410 = vpack.c.b16 %v356, %v355
    %v411 = vpack.c.b16 %v358, %v357
    %v412 = vpack.c.b16 %v360, %v359
    %v413 = vpack.c.b16 %v362, %v361
    %v414 = vpack.c.b16 %v364, %v363
    %v415 = vpack.c.b16 %v366, %v365
    %v416 = vpack.c.b16 %v368, %v367
    %v417 = vpack.c.b16 %v370, %v369
    %v418 = vpack.c.b16 %v372, %v371
    %v419 = vpack.c.b16 %v374, %v373
    %v420 = vpack.c.b16 %v376, %v375
    %v421 = vpack.c.b16 %v378, %v377
    %v422 = vpack.c.b16 %v380, %v379
    %v423 = vpack.c.b16 %v382, %v381
    %v424 = vpack.c.b16 %v384, %v383
    %v425 = vpack.c.b16 %v386, %v385
    %v426 = vpack.c.b16 %v388, %v387
    %v427 = vpack.c.b16 %v390, %v389
    %v428 = vpack.c.b16 %v392, %v391
    %v429 = vpack.c.b16 %v394, %v393
    %v430 = vpack.c.b16 %v396, %v395
    %v431 = vpack.c.b16 %v398, %v397
    %v432 = vpack.c.b16 %v400, %v399
    %465 = vmatpush.bf16.msra.mxu0 %v408
    %466 = vmatpush.bf16.msra.mxu0 %v407
    %467 = vmatpush.bf16.msra.mxu0 %v406
    %468 = vmatpush.bf16.msra.mxu0 %v405
    %469 = vmatpush.bf16.msra.mxu0 %v404
    %470 = vmatpush.bf16.msra.mxu0 %v403
    %471 = vmatpush.bf16.msra.mxu0 %v402
    %472 = vmatpush.bf16.msra.mxu0 %v401
    %473 = vmatmul.bf16.gmra.mxu0 %v201
    %v474 = vpop.f32.mrf.mxu0
    %v475 = vadd.f32 %v271, %v474
    %v476 = vpop.f32.mrf.mxu0
    %477 = vdwg.mxu0
    %478 = vmatpush.bf16.msra.mxu0 %v416
    %479 = vmatpush.bf16.msra.mxu0 %v415
    %480 = vmatpush.bf16.msra.mxu0 %v414
    %481 = vmatpush.bf16.msra.mxu0 %v413
    %482 = vmatpush.bf16.msra.mxu0 %v412
    %483 = vmatpush.bf16.msra.mxu0 %v411
    %484 = vmatpush.bf16.msra.mxu0 %v410
    %485 = vmatpush.bf16.msra.mxu0 %v409
    %486 = vmatmul.bf16.gmra.mxu0 %v202
    %v487 = vpop.f32.mrf.mxu0
    %v488 = vadd.f32 %v475, %v487
    %v489 = vpop.f32.mrf.mxu0
    %490 = vdwg.mxu0
    %491 = vmatpush.bf16.msra.mxu0 %v424
    %492 = vmatpush.bf16.msra.mxu0 %v423
    %493 = vmatpush.bf16.msra.mxu0 %v422
    %494 = vmatpush.bf16.msra.mxu0 %v421
    %495 = vmatpush.bf16.msra.mxu0 %v420
    %496 = vmatpush.bf16.msra.mxu0 %v419
    %497 = vmatpush.bf16.msra.mxu0 %v418
    %498 = vmatpush.bf16.msra.mxu0 %v417
    %499 = vmatmul.bf16.gmra.mxu0 %v203
    %v500 = vpop.f32.mrf.mxu0
    %v501 = vadd.f32 %v488, %v500
    %v502 = vpop.f32.mrf.mxu0
    %503 = vdwg.mxu0
    %504 = vmatpush.bf16.msra.mxu0 %v432
    %505 = vmatpush.bf16.msra.mxu0 %v431
    %506 = vmatpush.bf16.msra.mxu0 %v430
    %507 = vmatpush.bf16.msra.mxu0 %v429
    %508 = vmatpush.bf16.msra.mxu0 %v428
    %509 = vmatpush.bf16.msra.mxu0 %v427
    %510 = vmatpush.bf16.msra.mxu0 %v426
    %511 = vmatpush.bf16.msra.mxu0 %v425
    %512 = vmatmul.bf16.gmra.mxu0 %v204
    %v513 = vpop.f32.mrf.mxu0
    %v514 = vadd.f32 %v501, %v513
    %v515 = vpop.f32.mrf.mxu0
    %516 = vdwg.mxu0
    %vm517 = vcmask 1043456
    %v518 = vsel %vm517, %v514, 0.0
    %519 = vadd.xlane.f32.xlu0 %v518
    %v520 = vpop.xlane.xlu0 %519
    %v521 = vsub.f32 %v520, %v514
    %v522 = vmul.f32 %v521, 0.125
    %v523 = vsub.f32 %v514, %v522
    %525 = vset.pattern.permute.xlu0 8
    %526 = vperm.xlu0 %525, %v523
    %v527 = vpop.permute.xlu0 %526
    %v529 = vadd.f32 %v514, %v527
    %530 = vst [vmem:[#allocation10] sm:$0xf] %v529
    // Predicated region
    $region38: #{tpu_custom_call.1} parent=1 // pred_check
      _
    $region39: #{tpu_custom_call.1} parent=1 // pred_check_branch
      %532 = sbr.rel (0) target = $region41
    $region40: #{tpu_custom_call.1} parent=1 // pred_region
      %534 = vsyncadd [#allocation4], 0
      %s536 = sshll.u32 [#allocation10], 4
      %s537 = int_to_ptr.vmem [resolvable:$true] %s536
      %s538 = sshll.u32 %s5, 4
      %s539 = int_to_ptr.hbm [resolvable:$true] %s538
      %541 = dma.vmem_to_hbm [thread:$0]  %s537, 64, %s539, [#allocation4]
    $region41: #{tpu_custom_call.1} parent=1 // pred_fallthru
      _
    // Predicated region
    $region42: #{tpu_custom_call.1} parent=1 // pred_check
      _
    $region43: #{tpu_custom_call.1} parent=1 // pred_check_branch
      %543 = sbr.rel (0) target = $region45
    $region44: #{tpu_custom_call.1} parent=1 // pred_region
      %545 = dma.done [#allocation4], 64
    $region45: #{tpu_custom_call.1} parent=1 // pred_fallthru
      _
    %546 = vsyncpa [#allocation3], 1
    %547 = vsyncpa [#allocation6], 1
    %548 = vsyncpa [#allocation9], 1
    %549 = vsyncpa [#allocation4], 1

</llo_original>
